<compile_context>
chip_gen: v5e
topology: v5e:2x2
jax: 0.10.0
libtpu: 0.0.40
codegen_flags: <defaults>
</compile_context>

<pallas_src>
import functools

import jax
import jax.numpy as jnp
from jax import lax
from jax.experimental import pallas as pl
from jax.experimental.pallas import tpu as pltpu


def policy_kernel(x_ref, w1_ref, b1_ref, w2_ref, b2_ref, wh_ref, bh_ref,
                  out_ref, *, action_dim):
    # Shared trunk: Linear -> ReLU -> (Dropout = identity), x2.
    # bf16 MXU inputs, f32 accumulation; bias/ReLU in f32.
    h = jnp.dot(x_ref[...], w1_ref[...], preferred_element_type=jnp.float32)
    h = jnp.maximum(h + b1_ref[...], 0.0)

    h = jnp.dot(h.astype(jnp.bfloat16), w2_ref[...],
                preferred_element_type=jnp.float32)
    h = jnp.maximum(h + b2_ref[...], 0.0)

    # Fused heads: single matmul producing a lane-dense [TB, 128] slab whose
    # first 2A lanes are [mean_pre | log_std_pre] (remaining lanes are padding).
    z = jnp.dot(h.astype(jnp.bfloat16), wh_ref[...],
                preferred_element_type=jnp.float32) + bh_ref[...]

    # Lane mask selects tanh for mean lanes, clamp for log_std (+padding) lanes;
    # no cross-lane slicing/concat, one unmasked full-width store.
    lane = lax.broadcasted_iota(jnp.int32, z.shape, 1)
    out_ref[...] = jnp.where(lane < action_dim,
                             jnp.tanh(z),
                             jnp.clip(z, -20.0, 2.0))


def _round_up(n, m):
    return ((n + m - 1) // m) * m


def _batch_tile(batch, max_tb):
    """Batch tile: multiple of 16 (bf16 sublane packing), capped at max_tb, and
    capped so the grid has >=2 steps when the batch permits (v7x megacore)."""
    b16 = _round_up(batch, 16)
    tb = min(max_tb, b16)
    if b16 >= 32:
        tb = min(tb, _round_up((b16 + 1) // 2, 16))
    return tb


@functools.partial(jax.jit, static_argnames=("action_dim", "max_tb"))
def policy_forward(x, params, action_dim, max_tb=1024):
    """x: [B, state_dim] float32. Returns (mean [B, A], log_std [B, A]) in f32."""
    w1, b1, w2, b2, wh, bh = params
    B, state_dim = x.shape
    h1, h2 = w1.shape[1], w2.shape[1]
    head_w = wh.shape[1]              # lane-padded head width (multiple of 128)

    TB = _batch_tile(B, max_tb)
    Bp = _round_up(B, TB)
    if Bp != B:
        x = jnp.pad(x, ((0, Bp - B), (0, 0)))
    x = x.astype(jnp.bfloat16)        # halve x DMA bytes; MXU accumulates in f32

    # Advisory cost hint for XLA scheduling around the custom call.
    flops = 2 * Bp * (state_dim * h1 + h1 * h2 + h2 * head_w)
    bytes_accessed = (Bp * state_dim * 2
                      + (w1.size + w2.size + wh.size) * 2
                      + (b1.size + b2.size + bh.size) * 4
                      + Bp * head_w * 4)
    cost = pl.CostEstimate(flops=flops,
                           transcendentals=Bp * head_w,
                           bytes_accessed=bytes_accessed)

    const_map = lambda i: (0, 0)
    packed = pl.pallas_call(
        functools.partial(policy_kernel, action_dim=action_dim),
        out_shape=jax.ShapeDtypeStruct((Bp, head_w), jnp.float32),
        grid=(Bp // TB,),
        in_specs=[
            pl.BlockSpec((TB, state_dim), lambda i: (i, 0)),   # x: batch-tiled
            pl.BlockSpec(w1.shape, const_map),                 # weights/biases:
            pl.BlockSpec(b1.shape, const_map),                 # VMEM-resident
            pl.BlockSpec(w2.shape, const_map),
            pl.BlockSpec(b2.shape, const_map),
            pl.BlockSpec(wh.shape, const_map),
            pl.BlockSpec(bh.shape, const_map),
        ],
        out_specs=pl.BlockSpec((TB, head_w), lambda i: (i, 0)),  # lane-dense slab
        compiler_params=pltpu.CompilerParams(
            dimension_semantics=("parallel",)),                  # 2x on v7x megacore
        cost_estimate=cost,
    )(x, w1, b1, w2, b2, wh, bh)

    packed = packed[:B]
    return packed[:, :action_dim], packed[:, action_dim:2 * action_dim]


def init_linear(key, in_dim, out_dim):
    """Mimics torch.nn.Linear default init U(-1/sqrt(in), 1/sqrt(in)).
    Weight returned as [in_dim, out_dim] (transposed for row-major matmul)."""
    kw, kb = jax.random.split(key)
    bound = 1.0 / jnp.sqrt(float(in_dim))
    w = jax.random.uniform(kw, (in_dim, out_dim), jnp.float32, -bound, bound)
    b = jax.random.uniform(kb, (1, out_dim), jnp.float32, -bound, bound)
    return w, b


def init_policy_params(key, state_dim, action_dim, hidden_dims=(256, 128)):
    """Returns (w1, b1, w2, b2, wh, bh): weights bf16, biases f32.
    wh/bh are the mean and log_std heads concatenated along the output dim and
    zero-padded to a multiple of 128 lanes (lane-dense kernel output)."""
    keys = jax.random.split(key, len(hidden_dims) + 2)
    trunk = []
    in_dim = state_dim
    for i, h in enumerate(hidden_dims):
        w, b = init_linear(keys[i], in_dim, h)
        trunk.extend([w.astype(jnp.bfloat16), b])
        in_dim = h
    wm, bm = init_linear(keys[-2], in_dim, action_dim)
    ws, bs = init_linear(keys[-1], in_dim, action_dim)
    head_w = _round_up(2 * action_dim, 128)
    pad = head_w - 2 * action_dim
    wh = jnp.concatenate([wm, ws], axis=1)                      # [hidden, 2A]
    bh = jnp.concatenate([bm, bs], axis=1)                      # [1, 2A]
    wh = jnp.pad(wh, ((0, 0), (0, pad))).astype(jnp.bfloat16)   # [hidden, 128k]
    bh = jnp.pad(bh, ((0, 0), (0, pad)))                        # [1, 128k] f32
    return tuple(trunk) + (wh, bh)


def reference_forward(x, params, action_dim):
    """Pure-JAX reference with the same bf16-in / f32-accumulate semantics."""
    w1, b1, w2, b2, wh, bh = params
    h = jnp.dot(x.astype(jnp.bfloat16), w1, preferred_element_type=jnp.float32)
    h = jnp.maximum(h + b1, 0.0)
    h = jnp.dot(h.astype(jnp.bfloat16), w2, preferred_element_type=jnp.float32)
    h = jnp.maximum(h + b2, 0.0)
    z = jnp.dot(h.astype(jnp.bfloat16), wh, preferred_element_type=jnp.float32) + bh
    mean = jnp.tanh(z[:, :action_dim])
    log_std = jnp.clip(z[:, action_dim:2 * action_dim], -20.0, 2.0)
    return mean, log_std


if __name__ == "__main__":
    key = jax.random.PRNGKey(0)
    k_params, k_x = jax.random.split(key)

    B, STATE_DIM, ACTION_DIM = 8, 32, 8
    HIDDEN_DIMS = (256, 128)

    params = init_policy_params(k_params, STATE_DIM, ACTION_DIM, HIDDEN_DIMS)
    x = jax.random.normal(k_x, (B, STATE_DIM), jnp.float32)

    mean, log_std = policy_forward(x, params, ACTION_DIM)
    jax.block_until_ready((mean, log_std))

    # sanity check against pure-JAX reference with matched bf16/f32 semantics
    mean_ref, log_std_ref = reference_forward(x, params, ACTION_DIM)
    assert mean.shape == (B, ACTION_DIM) and log_std.shape == (B, ACTION_DIM)
    assert jnp.allclose(mean, mean_ref, atol=1e-3, rtol=1e-3)
    assert jnp.allclose(log_std, log_std_ref, atol=1e-3, rtol=1e-3)
    assert bool(jnp.all(log_std <= 2.0)) and bool(jnp.all(log_std >= -20.0))

    print("KERNEL_OK")
</pallas_src>

<mosaic_0001>
module attributes {stable_mosaic.version = 11 : i64} {
  func.func @policy_kernel(%arg0: i32, %arg1: memref<16x32xbf16, #tpu.memory_space<vmem>>, %arg2: memref<32x256xbf16, #tpu.memory_space<vmem>>, %arg3: memref<1x256xf32, #tpu.memory_space<vmem>>, %arg4: memref<256x128xbf16, #tpu.memory_space<vmem>>, %arg5: memref<1x128xf32, #tpu.memory_space<vmem>>, %arg6: memref<128x128xbf16, #tpu.memory_space<vmem>>, %arg7: memref<1x128xf32, #tpu.memory_space<vmem>>, %arg8: memref<16x128xf32, #tpu.memory_space<vmem>>) attributes {dimension_semantics = [#tpu.dimension_semantics<parallel>], iteration_bounds = array<i64: 1>, scalar_prefetch = 0 : i64, scratch_operands = 0 : i64, tpu.core_type = #tpu.core_type<tc>, window_params = [{transform_indices = @transform_0, window_bounds = array<i64: 16, 32>}, {pipeline_mode = #tpu.pipeline_mode<synchronous>, transform_indices = @transform_1, window_bounds = array<i64: 32, 256>}, {pipeline_mode = #tpu.pipeline_mode<synchronous>, transform_indices = @transform_2, window_bounds = array<i64: 1, 256>}, {pipeline_mode = #tpu.pipeline_mode<synchronous>, transform_indices = @transform_3, window_bounds = array<i64: 256, 128>}, {pipeline_mode = #tpu.pipeline_mode<synchronous>, transform_indices = @transform_4, window_bounds = array<i64: 1, 128>}, {pipeline_mode = #tpu.pipeline_mode<synchronous>, transform_indices = @transform_5, window_bounds = array<i64: 128, 128>}, {pipeline_mode = #tpu.pipeline_mode<synchronous>, transform_indices = @transform_6, window_bounds = array<i64: 1, 128>}, {transform_indices = @transform_7, window_bounds = array<i64: 16, 128>}]} {
    %c0 = arith.constant 0 : index
    %c0_0 = arith.constant 0 : index
    %0 = vector.load %arg1[%c0, %c0_0] : memref<16x32xbf16, #tpu.memory_space<vmem>>, vector<16x32xbf16>
    %c0_1 = arith.constant 0 : index
    %c0_2 = arith.constant 0 : index
    %1 = vector.load %arg2[%c0_1, %c0_2] : memref<32x256xbf16, #tpu.memory_space<vmem>>, vector<32x256xbf16>
    %cst = arith.constant dense<0.000000e+00> : vector<16x256xf32>
    %2 = tpu.matmul %0, %1, %cst {dimension_numbers = #tpu.dot_dimension_numbers<[1], [0], [0], [1], [0, 0, 1, 1], [], []>} : vector<16x32xbf16>, vector<32x256xbf16>, vector<16x256xf32> -> vector<16x256xf32>
    %c0_3 = arith.constant 0 : index
    %c0_4 = arith.constant 0 : index
    %3 = vector.load %arg3[%c0_3, %c0_4] : memref<1x256xf32, #tpu.memory_space<vmem>>, vector<1x256xf32>
    %4 = vector.broadcast %3 : vector<1x256xf32> to vector<16x256xf32>
    %5 = arith.addf %2, %4 : vector<16x256xf32>
    %cst_5 = arith.constant 0.000000e+00 : f32
    %6 = vector.broadcast %cst_5 : f32 to vector<16x256xf32>
    %7 = arith.maximumf %5, %6 : vector<16x256xf32>
    %8 = arith.truncf %7 : vector<16x256xf32> to vector<16x256xbf16>
    %c0_6 = arith.constant 0 : index
    %c0_7 = arith.constant 0 : index
    %9 = vector.load %arg4[%c0_6, %c0_7] : memref<256x128xbf16, #tpu.memory_space<vmem>>, vector<256x128xbf16>
    %cst_8 = arith.constant dense<0.000000e+00> : vector<16x128xf32>
    %10 = tpu.matmul %8, %9, %cst_8 {dimension_numbers = #tpu.dot_dimension_numbers<[1], [0], [0], [1], [0, 0, 1, 1], [], []>} : vector<16x256xbf16>, vector<256x128xbf16>, vector<16x128xf32> -> vector<16x128xf32>
    %c0_9 = arith.constant 0 : index
    %c0_10 = arith.constant 0 : index
    %11 = vector.load %arg5[%c0_9, %c0_10] : memref<1x128xf32, #tpu.memory_space<vmem>>, vector<1x128xf32>
    %12 = vector.broadcast %11 : vector<1x128xf32> to vector<16x128xf32>
    %13 = arith.addf %10, %12 : vector<16x128xf32>
    %cst_11 = arith.constant 0.000000e+00 : f32
    %14 = vector.broadcast %cst_11 : f32 to vector<16x128xf32>
    %15 = arith.maximumf %13, %14 : vector<16x128xf32>
    %16 = arith.truncf %15 : vector<16x128xf32> to vector<16x128xbf16>
    %c0_12 = arith.constant 0 : index
    %c0_13 = arith.constant 0 : index
    %17 = vector.load %arg6[%c0_12, %c0_13] : memref<128x128xbf16, #tpu.memory_space<vmem>>, vector<128x128xbf16>
    %cst_14 = arith.constant dense<0.000000e+00> : vector<16x128xf32>
    %18 = tpu.matmul %16, %17, %cst_14 {dimension_numbers = #tpu.dot_dimension_numbers<[1], [0], [0], [1], [0, 0, 1, 1], [], []>} : vector<16x128xbf16>, vector<128x128xbf16>, vector<16x128xf32> -> vector<16x128xf32>
    %c0_15 = arith.constant 0 : index
    %c0_16 = arith.constant 0 : index
    %19 = vector.load %arg7[%c0_15, %c0_16] : memref<1x128xf32, #tpu.memory_space<vmem>>, vector<1x128xf32>
    %20 = vector.broadcast %19 : vector<1x128xf32> to vector<16x128xf32>
    %21 = arith.addf %18, %20 : vector<16x128xf32>
    %22 = tpu.iota {dimensions = array<i32: 1>} : vector<16x128xi32>
    %c8_i32 = arith.constant 8 : i32
    %23 = vector.broadcast %c8_i32 : i32 to vector<16x128xi32>
    %24 = arith.cmpi slt, %22, %23 : vector<16x128xi32>
    %25 = math.tanh %21 : vector<16x128xf32>
    %cst_17 = arith.constant -2.000000e+01 : f32
    %cst_18 = arith.constant 2.000000e+00 : f32
    %26 = vector.broadcast %cst_17 : f32 to vector<16x128xf32>
    %27 = arith.maximumf %26, %21 : vector<16x128xf32>
    %28 = vector.broadcast %cst_18 : f32 to vector<16x128xf32>
    %29 = arith.minimumf %28, %27 : vector<16x128xf32>
    %30 = arith.select %24, %25, %29 : vector<16x128xi1>, vector<16x128xf32>
    %c0_19 = arith.constant 0 : index
    %c0_20 = arith.constant 0 : index
    %31 = vector.load %arg8[%c0_19, %c0_20] : memref<16x128xf32, #tpu.memory_space<vmem>>, vector<16x128xf32>
    tpu.vector_store %arg8[%c0_19, %c0_20], %30 {strides = array<i32>} : memref<16x128xf32, #tpu.memory_space<vmem>>, vector<16x128xf32>,
    return
  }
  func.func @transform_0(%arg0: i32) -> (i32, i32) {
    %c0_i32 = arith.constant 0 : i32
    %c0_i32_0 = arith.constant 0 : i32
    return %arg0, %c0_i32 : i32, i32
  }
  func.func @transform_1(%arg0: i32) -> (i32, i32) {
    %c0_i32 = arith.constant 0 : i32
    %c0_i32_0 = arith.constant 0 : i32
    %c0_i32_1 = arith.constant 0 : i32
    return %c0_i32, %c0_i32_0 : i32, i32
  }
  func.func @transform_2(%arg0: i32) -> (i32, i32) {
    %c0_i32 = arith.constant 0 : i32
    %c0_i32_0 = arith.constant 0 : i32
    %c0_i32_1 = arith.constant 0 : i32
    return %c0_i32, %c0_i32_0 : i32, i32
  }
  func.func @transform_3(%arg0: i32) -> (i32, i32) {
    %c0_i32 = arith.constant 0 : i32
    %c0_i32_0 = arith.constant 0 : i32
    %c0_i32_1 = arith.constant 0 : i32
    return %c0_i32, %c0_i32_0 : i32, i32
  }
  func.func @transform_4(%arg0: i32) -> (i32, i32) {
    %c0_i32 = arith.constant 0 : i32
    %c0_i32_0 = arith.constant 0 : i32
    %c0_i32_1 = arith.constant 0 : i32
    return %c0_i32, %c0_i32_0 : i32, i32
  }
  func.func @transform_5(%arg0: i32) -> (i32, i32) {
    %c0_i32 = arith.constant 0 : i32
    %c0_i32_0 = arith.constant 0 : i32
    %c0_i32_1 = arith.constant 0 : i32
    return %c0_i32, %c0_i32_0 : i32, i32
  }
  func.func @transform_6(%arg0: i32) -> (i32, i32) {
    %c0_i32 = arith.constant 0 : i32
    %c0_i32_0 = arith.constant 0 : i32
    %c0_i32_1 = arith.constant 0 : i32
    return %c0_i32, %c0_i32_0 : i32, i32
  }
  func.func @transform_7(%arg0: i32) -> (i32, i32) {
    %c0_i32 = arith.constant 0 : i32
    %c0_i32_0 = arith.constant 0 : i32
    return %arg0, %c0_i32 : i32, i32
  }
}

</mosaic_0001>

<llo_original>
// kernel: policy_forward.1
$region0: #{policy_forward.1}
  #allocation0 [shape = 'u32[]', space=smem, size = 0x4, offset = 0x4, fixed_abs, tag = 'smem constant byte address 0x4 - core index']
  #allocation1 [shape = 'u32[72,128]{1,0:T(1,128)}', space=vmem, size = 0x9000, scoped, tag = 'internal scratch']
  %s0 = inlined_call_operand.vmem [shape: bf16[16,32], index: 0, kind: input, shape index: {}]
  %s1 = inlined_call_operand.hbm [shape: bf16[32,256], index: 1, kind: input, shape index: {}]
  %s2 = inlined_call_operand.vmem [shape: f32[1,256], index: 2, kind: input, shape index: {}]
  %s3 = inlined_call_operand.hbm [shape: bf16[256,128], index: 3, kind: input, shape index: {}]
  %s4 = inlined_call_operand.vmem [shape: f32[1,128], index: 4, kind: input, shape index: {}]
  %s5 = inlined_call_operand.hbm [shape: bf16[128,128], index: 5, kind: input, shape index: {}]
  %s6 = inlined_call_operand.vmem [shape: f32[1,128], index: 6, kind: input, shape index: {}]
  %s7 = inlined_call_operand.vmem [shape: f32[16,128], index: 7, kind: output, shape index: {}]
  %s8 = sld [smem:[#allocation0]]
  $region50: #{policy_forward.1} parent=0
    _
  %s10 = ssub.s32 1, %s8
  %s11 = scalar_select 0, %s10, %s8
  $region1: #{policy_forward.1} parent=0
    #allocation2 [shape = 'u8[16384]{0}', space=vmem, size = 0x4000, scoped, tag = 'input window, operand 1, single buffered']
    #allocation3 [shape = 's32[1]{0}', space=sflag, size = 0x4, scoped, tag = 'scoped memory for policy_forward.1']
    #allocation4 [shape = 'u8[65536]{0}', space=vmem, size = 0x10000, scoped, tag = 'input window, operand 3, single buffered']
    #allocation5 [shape = 's32[1]{0}', space=sflag, size = 0x4, scoped, tag = 'scoped memory for policy_forward.1']
    #allocation6 [shape = 'u8[32768]{0}', space=vmem, size = 0x8000, scoped, tag = 'input window, operand 5, single buffered']
    %12 = vsyncpa [#allocation3], 0
    %13 = vsyncpa [#allocation5], 0
    // Predicated region
    $region2: #{policy_forward.1} parent=1 // pred_check
      _
    $region3: #{policy_forward.1} parent=1 // pred_check_branch
      %15 = sbr.rel (0) target = $region5
    $region4: #{policy_forward.1} parent=1 // pred_region
      _
    $region5: #{policy_forward.1} parent=1 // pred_fallthru
      _
    // Predicated region
    $region6: #{policy_forward.1} parent=1 // pred_check
      _
    $region7: #{policy_forward.1} parent=1 // pred_check_branch
      %17 = sbr.rel (0) target = $region9
    $region8: #{policy_forward.1} parent=1 // pred_region
      %19 = vsyncadd [#allocation3], 0
      %s20 = sshll.u32 %s1, 4
      %s21 = int_to_ptr.hbm [resolvable:$true] %s20
      %s22 = sshll.u32 [#allocation2], 4
      %s23 = int_to_ptr.vmem [resolvable:$true] %s22
      %28 = dma.hbm_to_vmem [thread:$0]  %s21, 512, %s23, [#allocation3], 128, 128, 8
    $region9: #{policy_forward.1} parent=1 // pred_fallthru
      _
    // Predicated region
    $region10: #{policy_forward.1} parent=1 // pred_check
      _
    $region11: #{policy_forward.1} parent=1 // pred_check_branch
      %30 = sbr.rel (0) target = $region13
    $region12: #{policy_forward.1} parent=1 // pred_region
      _
    $region13: #{policy_forward.1} parent=1 // pred_fallthru
      _
    // Predicated region
    $region14: #{policy_forward.1} parent=1 // pred_check
      _
    $region15: #{policy_forward.1} parent=1 // pred_check_branch
      %32 = sbr.rel (0) target = $region17
    $region16: #{policy_forward.1} parent=1 // pred_region
      %34 = vsyncadd [#allocation5], 0
      %s35 = sshll.u32 %s3, 4
      %s36 = int_to_ptr.hbm [resolvable:$true] %s35
      %s37 = sshll.u32 [#allocation4], 4
      %s38 = int_to_ptr.vmem [resolvable:$true] %s37
      %43 = dma.hbm_to_vmem [thread:$0]  %s36, 2048, %s38, [#allocation5], 64, 64, 4
    $region17: #{policy_forward.1} parent=1 // pred_fallthru
      _
    // Predicated region
    $region18: #{policy_forward.1} parent=1 // pred_check
      _
    $region19: #{policy_forward.1} parent=1 // pred_check_branch
      %45 = sbr.rel (0) target = $region21
    $region20: #{policy_forward.1} parent=1 // pred_region
      _
    $region21: #{policy_forward.1} parent=1 // pred_fallthru
      _
    // Predicated region
    $region22: #{policy_forward.1} parent=1 // pred_check
      _
    $region23: #{policy_forward.1} parent=1 // pred_check_branch
      %47 = sbr.rel (0) target = $region25
    $region24: #{policy_forward.1} parent=1 // pred_region
      %49 = vsyncadd [#allocation5], 0
      %s50 = sshll.u32 %s5, 4
      %s51 = int_to_ptr.hbm [resolvable:$true] %s50
      %s52 = sshll.u32 [#allocation6], 4
      %s53 = int_to_ptr.vmem [resolvable:$true] %s52
      %58 = dma.hbm_to_vmem [thread:$0]  %s51, 1024, %s53, [#allocation5], 64, 64, 4
    $region25: #{policy_forward.1} parent=1 // pred_fallthru
      _
    // Predicated region
    $region26: #{policy_forward.1} parent=1 // pred_check
      _
    $region27: #{policy_forward.1} parent=1 // pred_check_branch
      %60 = sbr.rel (0) target = $region29
    $region28: #{policy_forward.1} parent=1 // pred_region
      _
    $region29: #{policy_forward.1} parent=1 // pred_fallthru
      _
    // Predicated region
    $region30: #{policy_forward.1} parent=1 // pred_check
      _
    $region31: #{policy_forward.1} parent=1 // pred_check_branch
      %62 = sbr.rel (0) target = $region33
    $region32: #{policy_forward.1} parent=1 // pred_region
      %64 = dma.done [#allocation3], 512
    $region33: #{policy_forward.1} parent=1 // pred_fallthru
      _
    // Predicated region
    $region34: #{policy_forward.1} parent=1 // pred_check
      _
    $region35: #{policy_forward.1} parent=1 // pred_check_branch
      %66 = sbr.rel (0) target = $region37
    $region36: #{policy_forward.1} parent=1 // pred_region
      %68 = dma.done [#allocation5], 2048
    $region37: #{policy_forward.1} parent=1 // pred_fallthru
      _
    // Predicated region
    $region38: #{policy_forward.1} parent=1 // pred_check
      _
    $region39: #{policy_forward.1} parent=1 // pred_check_branch
      %70 = sbr.rel (0) target = $region41
    $region40: #{policy_forward.1} parent=1 // pred_region
      %72 = dma.done [#allocation5], 1024
    $region41: #{policy_forward.1} parent=1 // pred_fallthru
      _
    %v74 = vld [vmem:[%s0] sm:$0xf]
    %v75 = vld [vmem:[%s0 + $0x4] sm:$0xf]
    %v76 = vld [vmem:[#allocation2] sm:$0xff]
    %v77 = vld [vmem:[#allocation2 + $0x8] sm:$0xff]
    %v78 = vld [vmem:[#allocation2 + $0x10] sm:$0xff]
    %v79 = vld [vmem:[#allocation2 + $0x18] sm:$0xff]
    %v80 = vld [vmem:[%s2] sm:$0x3]
    %v82 = vperm.slane %v80, 0
    %v83 = vperm.slane %v80, 1
    %v88 = vunpack.c.l.b16 %v74
    %v89 = vunpack.c.l.b16 %v75
    %v90 = vpack.c.b16 %v89, %v88
    %v95 = vunpack.c.l.b16 %v76
    %v96 = vunpack.c.h.b16 %v76
    %v97 = vunpack.c.l.b16 %v77
    %v98 = vunpack.c.h.b16 %v77
    %v99 = vunpack.c.l.b16 %v78
    %v100 = vunpack.c.h.b16 %v78
    %v101 = vunpack.c.l.b16 %v79
    %v102 = vunpack.c.h.b16 %v79
    %v103 = vpack.c.b16 %v97, %v95
    %v104 = vpack.c.b16 %v98, %v96
    %v105 = vpack.c.b16 %v101, %v99
    %v106 = vpack.c.b16 %v102, %v100
    %vm111 = vcmask 261120
    %v113 = vsel %vm111, %v90, 0
    %115 = vmatpush.bf16.msra.mxu0 0
    %116 = vmatpush.bf16.msra.mxu0 0
    %117 = vmatpush.bf16.msra.mxu0 0
    %118 = vmatpush.bf16.msra.mxu0 0
    %119 = vmatpush.bf16.msra.mxu0 0
    %120 = vmatpush.bf16.msra.mxu0 0
    %121 = vmatpush.bf16.msra.mxu0 %v105
    %122 = vmatpush.bf16.msra.mxu0 %v103
    %123 = vmatmul.bf16.gmra.mxu0 %v113
    %v124 = vpop.f32.mrf.mxu0
    %v125 = vadd.f32 %v82, %v124
    %v126 = vpop.f32.mrf.mxu0
    %v127 = vadd.f32 %v82, %v126
    %128 = vdwg.mxu0
    %129 = vmatpush.bf16.msra.mxu0 0
    %130 = vmatpush.bf16.msra.mxu0 0
    %131 = vmatpush.bf16.msra.mxu0 0
    %132 = vmatpush.bf16.msra.mxu0 0
    %133 = vmatpush.bf16.msra.mxu0 0
    %134 = vmatpush.bf16.msra.mxu0 0
    %135 = vmatpush.bf16.msra.mxu0 %v106
    %136 = vmatpush.bf16.msra.mxu0 %v104
    %137 = vmatmul.bf16.gmra.mxu0 %v113
    %v138 = vpop.f32.mrf.mxu0
    %v139 = vadd.f32 %v83, %v138
    %v140 = vpop.f32.mrf.mxu0
    %v141 = vadd.f32 %v83, %v140
    %142 = vdwg.mxu0
    %v143 = vmax.f32 %v125, 0.0
    %v144 = vmax.f32 %v139, 0.0
    %v145 = vmax.f32 %v127, 0.0
    %v146 = vmax.f32 %v141, 0.0
    %v147 = vpack.c.bf16 %v145, %v143
    %v148 = vpack.c.bf16 %v146, %v144
    %v149 = vld [vmem:[#allocation4] sm:$0xf]
    %v150 = vld [vmem:[#allocation4 + $0x4] sm:$0xf]
    %v151 = vld [vmem:[#allocation4 + $0x8] sm:$0xf]
    %v152 = vld [vmem:[#allocation4 + $0xc] sm:$0xf]
    %v153 = vld [vmem:[#allocation4 + $0x10] sm:$0xf]
    %v154 = vld [vmem:[#allocation4 + $0x14] sm:$0xf]
    %v155 = vld [vmem:[#allocation4 + $0x18] sm:$0xf]
    %v156 = vld [vmem:[#allocation4 + $0x1c] sm:$0xf]
    %v157 = vld [vmem:[#allocation4 + $0x20] sm:$0xf]
    %v158 = vld [vmem:[#allocation4 + $0x24] sm:$0xf]
    %v159 = vld [vmem:[#allocation4 + $0x28] sm:$0xf]
    %v160 = vld [vmem:[#allocation4 + $0x2c] sm:$0xf]
    %v161 = vld [vmem:[#allocation4 + $0x30] sm:$0xf]
    %v162 = vld [vmem:[#allocation4 + $0x34] sm:$0xf]
    %v163 = vld [vmem:[#allocation4 + $0x38] sm:$0xf]
    %v164 = vld [vmem:[#allocation4 + $0x3c] sm:$0xf]
    %v165 = vld [vmem:[#allocation4 + $0x40] sm:$0xf]
    %v166 = vld [vmem:[#allocation4 + $0x44] sm:$0xf]
    %v167 = vld [vmem:[#allocation4 + $0x48] sm:$0xf]
    %v168 = vld [vmem:[#allocation4 + $0x4c] sm:$0xf]
    %v169 = vld [vmem:[#allocation4 + $0x50] sm:$0xf]
    %v170 = vld [vmem:[#allocation4 + $0x54] sm:$0xf]
    %v171 = vld [vmem:[#allocation4 + $0x58] sm:$0xf]
    %v172 = vld [vmem:[#allocation4 + $0x5c] sm:$0xf]
    %v173 = vld [vmem:[#allocation4 + $0x60] sm:$0xf]
    %v174 = vld [vmem:[#allocation4 + $0x64] sm:$0xf]
    %v175 = vld [vmem:[#allocation4 + $0x68] sm:$0xf]
    %v176 = vld [vmem:[#allocation4 + $0x6c] sm:$0xf]
    %v177 = vld [vmem:[#allocation4 + $0x70] sm:$0xf]
    %v178 = vld [vmem:[#allocation4 + $0x74] sm:$0xf]
    %v179 = vld [vmem:[#allocation4 + $0x78] sm:$0xf]
    %v180 = vld [vmem:[#allocation4 + $0x7c] sm:$0xf]
    %v181 = vld [vmem:[%s4] sm:$0x1]
    %v183 = vperm.slane %v181, 0
    %v217 = vunpack.c.l.b16 %v149
    %v218 = vunpack.c.l.b16 %v150
    %v219 = vunpack.c.l.b16 %v151
    %v220 = vunpack.c.l.b16 %v152
    %v221 = vunpack.c.l.b16 %v153
    %v222 = vunpack.c.l.b16 %v154
    %v223 = vunpack.c.l.b16 %v155
    %v224 = vunpack.c.l.b16 %v156
    %v225 = vunpack.c.l.b16 %v157
    %v226 = vunpack.c.l.b16 %v158
    %v227 = vunpack.c.l.b16 %v159
    %v228 = vunpack.c.l.b16 %v160
    %v229 = vunpack.c.l.b16 %v161
    %v230 = vunpack.c.l.b16 %v162
    %v231 = vunpack.c.l.b16 %v163
    %v232 = vunpack.c.l.b16 %v164
    %v233 = vunpack.c.l.b16 %v165
    %v234 = vunpack.c.l.b16 %v166
    %v235 = vunpack.c.l.b16 %v167
    %v236 = vunpack.c.l.b16 %v168
    %v237 = vunpack.c.l.b16 %v169
    %v238 = vunpack.c.l.b16 %v170
    %v239 = vunpack.c.l.b16 %v171
    %v240 = vunpack.c.l.b16 %v172
    %v241 = vunpack.c.l.b16 %v173
    %v242 = vunpack.c.l.b16 %v174
    %v243 = vunpack.c.l.b16 %v175
    %v244 = vunpack.c.l.b16 %v176
    %v245 = vunpack.c.l.b16 %v177
    %v246 = vunpack.c.l.b16 %v178
    %v247 = vunpack.c.l.b16 %v179
    %v248 = vunpack.c.l.b16 %v180
    %v249 = vpack.c.b16 %v218, %v217
    %v250 = vpack.c.b16 %v220, %v219
    %v251 = vpack.c.b16 %v222, %v221
    %v252 = vpack.c.b16 %v224, %v223
    %v253 = vpack.c.b16 %v226, %v225
    %v254 = vpack.c.b16 %v228, %v227
    %v255 = vpack.c.b16 %v230, %v229
    %v256 = vpack.c.b16 %v232, %v231
    %v257 = vpack.c.b16 %v234, %v233
    %v258 = vpack.c.b16 %v236, %v235
    %v259 = vpack.c.b16 %v238, %v237
    %v260 = vpack.c.b16 %v240, %v239
    %v261 = vpack.c.b16 %v242, %v241
    %v262 = vpack.c.b16 %v244, %v243
    %v263 = vpack.c.b16 %v246, %v245
    %v264 = vpack.c.b16 %v248, %v247
    %281 = vmatpush.bf16.msra.mxu0 %v256
    %282 = vmatpush.bf16.msra.mxu0 %v255
    %283 = vmatpush.bf16.msra.mxu0 %v254
    %284 = vmatpush.bf16.msra.mxu0 %v253
    %285 = vmatpush.bf16.msra.mxu0 %v252
    %286 = vmatpush.bf16.msra.mxu0 %v251
    %287 = vmatpush.bf16.msra.mxu0 %v250
    %288 = vmatpush.bf16.msra.mxu0 %v249
    %289 = vmatmul.bf16.gmra.mxu0 %v147
    %v290 = vpop.f32.mrf.mxu0
    %v291 = vadd.f32 %v183, %v290
    %v292 = vpop.f32.mrf.mxu0
    %v293 = vadd.f32 %v183, %v292
    %294 = vdwg.mxu0
    %295 = vmatpush.bf16.msra.mxu0 %v264
    %296 = vmatpush.bf16.msra.mxu0 %v263
    %297 = vmatpush.bf16.msra.mxu0 %v262
    %298 = vmatpush.bf16.msra.mxu0 %v261
    %299 = vmatpush.bf16.msra.mxu0 %v260
    %300 = vmatpush.bf16.msra.mxu0 %v259
    %301 = vmatpush.bf16.msra.mxu0 %v258
    %302 = vmatpush.bf16.msra.mxu0 %v257
    %303 = vmatmul.bf16.gmra.mxu0 %v148
    %v304 = vpop.f32.mrf.mxu0
    %v305 = vadd.f32 %v291, %v304
    %v306 = vpop.f32.mrf.mxu0
    %v307 = vadd.f32 %v293, %v306
    %308 = vdwg.mxu0
    %v309 = vmax.f32 %v305, 0.0
    %v310 = vmax.f32 %v307, 0.0
    %v311 = vpack.c.bf16 %v310, %v309
    %v312 = vld [vmem:[#allocation6] sm:$0xf]
    %v313 = vld [vmem:[#allocation6 + $0x4] sm:$0xf]
    %v314 = vld [vmem:[#allocation6 + $0x8] sm:$0xf]
    %v315 = vld [vmem:[#allocation6 + $0xc] sm:$0xf]
    %v316 = vld [vmem:[#allocation6 + $0x10] sm:$0xf]
    %v317 = vld [vmem:[#allocation6 + $0x14] sm:$0xf]
    %v318 = vld [vmem:[#allocation6 + $0x18] sm:$0xf]
    %v319 = vld [vmem:[#allocation6 + $0x1c] sm:$0xf]
    %v320 = vld [vmem:[#allocation6 + $0x20] sm:$0xf]
    %v321 = vld [vmem:[#allocation6 + $0x24] sm:$0xf]
    %v322 = vld [vmem:[#allocation6 + $0x28] sm:$0xf]
    %v323 = vld [vmem:[#allocation6 + $0x2c] sm:$0xf]
    %v324 = vld [vmem:[#allocation6 + $0x30] sm:$0xf]
    %v325 = vld [vmem:[#allocation6 + $0x34] sm:$0xf]
    %v326 = vld [vmem:[#allocation6 + $0x38] sm:$0xf]
    %v327 = vld [vmem:[#allocation6 + $0x3c] sm:$0xf]
    %v328 = vld [vmem:[%s6] sm:$0x1]
    %v330 = vperm.slane %v328, 0
    %v348 = vunpack.c.l.b16 %v312
    %v349 = vunpack.c.l.b16 %v313
    %v350 = vunpack.c.l.b16 %v314
    %v351 = vunpack.c.l.b16 %v315
    %v352 = vunpack.c.l.b16 %v316
    %v353 = vunpack.c.l.b16 %v317
    %v354 = vunpack.c.l.b16 %v318
    %v355 = vunpack.c.l.b16 %v319
    %v356 = vunpack.c.l.b16 %v320
    %v357 = vunpack.c.l.b16 %v321
    %v358 = vunpack.c.l.b16 %v322
    %v359 = vunpack.c.l.b16 %v323
    %v360 = vunpack.c.l.b16 %v324
    %v361 = vunpack.c.l.b16 %v325
    %v362 = vunpack.c.l.b16 %v326
    %v363 = vunpack.c.l.b16 %v327
    %v364 = vpack.c.b16 %v349, %v348
    %v365 = vpack.c.b16 %v351, %v350
    %v366 = vpack.c.b16 %v353, %v352
    %v367 = vpack.c.b16 %v355, %v354
    %v368 = vpack.c.b16 %v357, %v356
    %v369 = vpack.c.b16 %v359, %v358
    %v370 = vpack.c.b16 %v361, %v360
    %v371 = vpack.c.b16 %v363, %v362
    %380 = vmatpush.bf16.msra.mxu0 %v371
    %381 = vmatpush.bf16.msra.mxu0 %v370
    %382 = vmatpush.bf16.msra.mxu0 %v369
    %383 = vmatpush.bf16.msra.mxu0 %v368
    %384 = vmatpush.bf16.msra.mxu0 %v367
    %385 = vmatpush.bf16.msra.mxu0 %v366
    %386 = vmatpush.bf16.msra.mxu0 %v365
    %387 = vmatpush.bf16.msra.mxu0 %v364
    %388 = vmatmul.bf16.gmra.mxu0 %v311
    %v389 = vpop.f32.mrf.mxu0
    %v390 = vadd.f32 %v330, %v389
    %v391 = vpop.f32.mrf.mxu0
    %v392 = vadd.f32 %v330, %v391
    %393 = vdwg.mxu0
    %v394 = vlaneseq
    %v395 = vand.u32 %v394, 127
    %vm396 = vcmp.lt.s32.totalorder %v395, 8
    %v397 = vtanh.pop %v390
    %v398 = vtanh.pop %v392
    %v399 = vmax.f32 %v390, -20.0
    %v400 = vmax.f32 %v392, -20.0
    %v401 = vmin.f32 %v399, 2.0
    %v402 = vmin.f32 %v400, 2.0
    %v403 = vsel %vm396, %v397, %v401
    %v404 = vsel %vm396, %v398, %v402
    %405 = vst [vmem:[%s7] sm:$0xff] %v403
    %406 = vst [vmem:[%s7 + $0x8] sm:$0xff] %v404
    // Predicated region
    $region42: #{policy_forward.1} parent=1 // pred_check
      _
    $region43: #{policy_forward.1} parent=1 // pred_check_branch
      %408 = sbr.rel (0) target = $region45
    $region44: #{policy_forward.1} parent=1 // pred_region
      _
    $region45: #{policy_forward.1} parent=1 // pred_fallthru
      _
    // Predicated region
    $region46: #{policy_forward.1} parent=1 // pred_check
      _
    $region47: #{policy_forward.1} parent=1 // pred_check_branch
      %410 = sbr.rel (0) target = $region49
    $region48: #{policy_forward.1} parent=1 // pred_region
      _
    $region49: #{policy_forward.1} parent=1 // pred_fallthru
      _
    %411 = vsyncpa [#allocation3], 1
    %412 = vsyncpa [#allocation5], 1

</llo_original>
